<compile_context>
chip_gen: v5e
topology: v5e:2x2
jax: 0.10.0
libtpu: 0.0.40
codegen_flags: <defaults>
</compile_context>

<pallas_src>
import jax
import jax.numpy as jnp
from jax.experimental import pallas as pl
from jax.experimental.pallas import tpu as pltpu


def _round_up(x, m):
    return (x + m - 1) // m * m


def _mlp_kernel(x_ref, w1_ref, b1_ref, w2_ref, b2_ref, o_ref):
    # Dropout(p=0.21) is identity at inference time.
    x = x_ref[...]                                              # [TB, F] bf16
    h = jnp.dot(x, w1_ref[...],
                preferred_element_type=jnp.float32)             # [TB, H] f32
    h = jnp.maximum(h + b1_ref[...], 0.0)                       # bias + ReLU (f32)
    h = h.astype(w2_ref.dtype)                                  # bf16 for MXU
    y = jnp.dot(h, w2_ref[...],
                preferred_element_type=jnp.float32)             # [TB, Cp] f32
    o_ref[...] = (y + b2_ref[...]).astype(o_ref.dtype)


def rem_linear_classifier(features, w1, b1, w2, b2, *, tile_b=512):
    """features: [B, F]. w1: [F, H], b1: [H], w2: [H, C], b2: [C].

    Weights are stored [in, out] (transposed vs. PyTorch's [out, in]) so the
    kernel computes y = relu(x @ w1 + b1) @ w2 + b2.
    """
    B, F = features.shape
    H = w1.shape[1]
    C = w2.shape[1]
    out_dtype = features.dtype

    # Lane-dense output: pad the class dim up to a multiple of 128 lanes with
    # zero weights / zero bias; slice back to C after the kernel.
    C_pad = _round_up(C, 128)

    # Batch tiling: tile must be a multiple of 8 sublanes; pad B to a multiple
    # of the tile so every grid step writes a full block.
    tb = _round_up(min(tile_b, _round_up(B, 8)), 8)
    B_pad = _round_up(B, tb)

    # bf16 inputs/weights, f32 biases (accumulation stays in f32).
    xb = features.astype(jnp.bfloat16)
    if B_pad != B:
        xb = jnp.pad(xb, ((0, B_pad - B), (0, 0)))
    w1b = w1.astype(jnp.bfloat16)
    w2b = jnp.pad(w2, ((0, 0), (0, C_pad - C))).astype(jnp.bfloat16)
    b1_2d = b1.reshape(1, H).astype(jnp.float32)
    b2_2d = jnp.pad(b2, (0, C_pad - C)).reshape(1, C_pad).astype(jnp.float32)

    grid = (B_pad // tb,)

    # VMEM budget: double-buffered x/out tiles + resident weights, with slack.
    tile_bytes = tb * F * 2 + tb * C_pad * 4
    resident_bytes = F * H * 2 + H * C_pad * 2 + (H + C_pad) * 4
    vmem_limit = min(32 * 1024 * 1024,
                     max(4 * 1024 * 1024,
                         2 * 2 * tile_bytes + resident_bytes + (1 << 20)))

    cost = pl.CostEstimate(
        flops=2 * B_pad * F * H + 2 * B_pad * H * C_pad,
        transcendentals=0,
        bytes_accessed=(B_pad * F * 2 + F * H * 2 + H * C_pad * 2
                        + (H + C_pad) * 4 + B_pad * C_pad * 4),
    )

    out = pl.pallas_call(
        _mlp_kernel,
        out_shape=jax.ShapeDtypeStruct((B_pad, C_pad), out_dtype),
        grid_spec=pl.GridSpec(
            grid=grid,
            in_specs=[
                pl.BlockSpec((tb, F), lambda i: (i, 0)),       # x tile (pipelined)
                pl.BlockSpec((F, H), lambda i: (0, 0)),        # w1 (resident)
                pl.BlockSpec((1, H), lambda i: (0, 0)),        # b1 (resident)
                pl.BlockSpec((H, C_pad), lambda i: (0, 0)),    # w2 (resident)
                pl.BlockSpec((1, C_pad), lambda i: (0, 0)),    # b2 (resident)
            ],
            out_specs=pl.BlockSpec((tb, C_pad), lambda i: (i, 0)),
        ),
        compiler_params=pltpu.CompilerParams(
            dimension_semantics=("parallel",),
            vmem_limit_bytes=vmem_limit,
        ),
        cost_estimate=cost,
    )(xb, w1b, b1_2d, w2b, b2_2d)

    return out[:B, :C]


def init_params(key, features_size, nb_classes, dtype=jnp.float32):
    """Deterministic init matching the PyTorch module's shapes (transposed)."""
    hidden = features_size // 2
    k1, k2, k3, k4 = jax.random.split(key, 4)
    lim1 = 1.0 / (features_size ** 0.5)
    lim2 = 1.0 / (hidden ** 0.5)
    w1 = jax.random.uniform(k1, (features_size, hidden), dtype, -lim1, lim1)
    b1 = jax.random.uniform(k2, (hidden,), dtype, -lim1, lim1)
    w2 = jax.random.uniform(k3, (hidden, nb_classes), dtype, -lim2, lim2)
    b2 = jax.random.uniform(k4, (nb_classes,), dtype, -lim2, lim2)
    return w1, b1, w2, b2


if __name__ == "__main__":
    features_size = 32
    nb_classes = 8
    batch = 40          # not a tile multiple -> exercises B padding + slicing

    key = jax.random.PRNGKey(0)
    kx, kp = jax.random.split(key)
    x = jax.random.normal(kx, (batch, features_size), jnp.float32)
    w1, b1, w2, b2 = init_params(kp, features_size, nb_classes)

    # Small tile so the demo runs a multi-step (pipelined) grid.
    out = rem_linear_classifier(x, w1, b1, w2, b2, tile_b=16)
    out = jax.block_until_ready(out)

    # Pure-JAX reference with the same bf16 rounding of operands and f32
    # accumulation (matches the kernel's mixed-precision path).
    xr = x.astype(jnp.bfloat16).astype(jnp.float32)
    w1r = w1.astype(jnp.bfloat16).astype(jnp.float32)
    w2r = w2.astype(jnp.bfloat16).astype(jnp.float32)
    h_ref = jnp.maximum(xr @ w1r + b1, 0.0)
    ref = h_ref.astype(jnp.bfloat16).astype(jnp.float32) @ w2r + b2

    assert out.shape == (batch, nb_classes)
    assert jnp.allclose(out, ref, atol=1e-3, rtol=1e-3)

    print("KERNEL_OK")
</pallas_src>

<mosaic_0001>
module attributes {stable_mosaic.version = 11 : i64} {
  func.func @_mlp_kernel(%arg0: i32, %arg1: memref<16x32xbf16, #tpu.memory_space<vmem>>, %arg2: memref<32x16xbf16, #tpu.memory_space<vmem>>, %arg3: memref<1x16xf32, #tpu.memory_space<vmem>>, %arg4: memref<16x128xbf16, #tpu.memory_space<vmem>>, %arg5: memref<1x128xf32, #tpu.memory_space<vmem>>, %arg6: memref<16x128xf32, #tpu.memory_space<vmem>>) attributes {dimension_semantics = [#tpu.dimension_semantics<parallel>], iteration_bounds = array<i64: 3>, scalar_prefetch = 0 : i64, scratch_operands = 0 : i64, tpu.core_type = #tpu.core_type<tc>, window_params = [{transform_indices = @transform_0, window_bounds = array<i64: 16, 32>}, {pipeline_mode = #tpu.pipeline_mode<synchronous>, transform_indices = @transform_1, window_bounds = array<i64: 32, 16>}, {pipeline_mode = #tpu.pipeline_mode<synchronous>, transform_indices = @transform_2, window_bounds = array<i64: 1, 16>}, {pipeline_mode = #tpu.pipeline_mode<synchronous>, transform_indices = @transform_3, window_bounds = array<i64: 16, 128>}, {pipeline_mode = #tpu.pipeline_mode<synchronous>, transform_indices = @transform_4, window_bounds = array<i64: 1, 128>}, {transform_indices = @transform_5, window_bounds = array<i64: 16, 128>}]} {
    %c0 = arith.constant 0 : index
    %c0_0 = arith.constant 0 : index
    %0 = vector.load %arg1[%c0, %c0_0] : memref<16x32xbf16, #tpu.memory_space<vmem>>, vector<16x32xbf16>
    %c0_1 = arith.constant 0 : index
    %c0_2 = arith.constant 0 : index
    %1 = vector.load %arg2[%c0_1, %c0_2] : memref<32x16xbf16, #tpu.memory_space<vmem>>, vector<32x16xbf16>
    %cst = arith.constant dense<0.000000e+00> : vector<16x16xf32>
    %2 = tpu.matmul %0, %1, %cst {dimension_numbers = #tpu.dot_dimension_numbers<[1], [0], [0], [1], [0, 0, 1, 1], [], []>} : vector<16x32xbf16>, vector<32x16xbf16>, vector<16x16xf32> -> vector<16x16xf32>
    %c0_3 = arith.constant 0 : index
    %c0_4 = arith.constant 0 : index
    %3 = vector.load %arg3[%c0_3, %c0_4] : memref<1x16xf32, #tpu.memory_space<vmem>>, vector<1x16xf32>
    %4 = vector.broadcast %3 : vector<1x16xf32> to vector<16x16xf32>
    %5 = arith.addf %2, %4 : vector<16x16xf32>
    %cst_5 = arith.constant 0.000000e+00 : f32
    %6 = vector.broadcast %cst_5 : f32 to vector<16x16xf32>
    %7 = arith.maximumf %5, %6 : vector<16x16xf32>
    %8 = arith.truncf %7 : vector<16x16xf32> to vector<16x16xbf16>
    %c0_6 = arith.constant 0 : index
    %c0_7 = arith.constant 0 : index
    %9 = vector.load %arg4[%c0_6, %c0_7] : memref<16x128xbf16, #tpu.memory_space<vmem>>, vector<16x128xbf16>
    %cst_8 = arith.constant dense<0.000000e+00> : vector<16x128xf32>
    %10 = tpu.matmul %8, %9, %cst_8 {dimension_numbers = #tpu.dot_dimension_numbers<[1], [0], [0], [1], [0, 0, 1, 1], [], []>} : vector<16x16xbf16>, vector<16x128xbf16>, vector<16x128xf32> -> vector<16x128xf32>
    %c0_9 = arith.constant 0 : index
    %c0_10 = arith.constant 0 : index
    %11 = vector.load %arg5[%c0_9, %c0_10] : memref<1x128xf32, #tpu.memory_space<vmem>>, vector<1x128xf32>
    %12 = vector.broadcast %11 : vector<1x128xf32> to vector<16x128xf32>
    %13 = arith.addf %10, %12 : vector<16x128xf32>
    %c0_11 = arith.constant 0 : index
    %c0_12 = arith.constant 0 : index
    %14 = vector.load %arg6[%c0_11, %c0_12] : memref<16x128xf32, #tpu.memory_space<vmem>>, vector<16x128xf32>
    tpu.vector_store %arg6[%c0_11, %c0_12], %13 {strides = array<i32>} : memref<16x128xf32, #tpu.memory_space<vmem>>, vector<16x128xf32>,
    return
  }
  func.func @transform_0(%arg0: i32) -> (i32, i32) {
    %c0_i32 = arith.constant 0 : i32
    %c0_i32_0 = arith.constant 0 : i32
    return %arg0, %c0_i32 : i32, i32
  }
  func.func @transform_1(%arg0: i32) -> (i32, i32) {
    %c0_i32 = arith.constant 0 : i32
    %c0_i32_0 = arith.constant 0 : i32
    %c0_i32_1 = arith.constant 0 : i32
    return %c0_i32, %c0_i32_0 : i32, i32
  }
  func.func @transform_2(%arg0: i32) -> (i32, i32) {
    %c0_i32 = arith.constant 0 : i32
    %c0_i32_0 = arith.constant 0 : i32
    %c0_i32_1 = arith.constant 0 : i32
    return %c0_i32, %c0_i32_0 : i32, i32
  }
  func.func @transform_3(%arg0: i32) -> (i32, i32) {
    %c0_i32 = arith.constant 0 : i32
    %c0_i32_0 = arith.constant 0 : i32
    %c0_i32_1 = arith.constant 0 : i32
    return %c0_i32, %c0_i32_0 : i32, i32
  }
  func.func @transform_4(%arg0: i32) -> (i32, i32) {
    %c0_i32 = arith.constant 0 : i32
    %c0_i32_0 = arith.constant 0 : i32
    %c0_i32_1 = arith.constant 0 : i32
    return %c0_i32, %c0_i32_0 : i32, i32
  }
  func.func @transform_5(%arg0: i32) -> (i32, i32) {
    %c0_i32 = arith.constant 0 : i32
    %c0_i32_0 = arith.constant 0 : i32
    return %arg0, %c0_i32 : i32, i32
  }
}

</mosaic_0001>

<llo_original>
// kernel: tpu_custom_call.1
$region0: #{tpu_custom_call.1}
  #allocation0 [shape = 'u32[]', space=smem, size = 0x4, offset = 0x4, fixed_abs, tag = 'smem constant byte address 0x4 - core index']
  #allocation1 [shape = 'u32[72,128]{1,0:T(1,128)}', space=vmem, size = 0x9000, scoped, tag = 'internal scratch']
  %s0 = inlined_call_operand.vmem [shape: bf16[48,32], index: 0, kind: input, shape index: {}]
  %s1 = inlined_call_operand.vmem [shape: bf16[32,16], index: 1, kind: input, shape index: {}]
  %s2 = inlined_call_operand.vmem [shape: f32[1,16], index: 2, kind: input, shape index: {}]
  %s3 = inlined_call_operand.vmem [shape: bf16[16,128], index: 3, kind: input, shape index: {}]
  %s4 = inlined_call_operand.vmem [shape: f32[1,128], index: 4, kind: input, shape index: {}]
  %s5 = inlined_call_operand.hbm [shape: f32[48,128], index: 5, kind: output, shape index: {}]
  %s6 = sld [smem:[#allocation0]]
  $region53: #{tpu_custom_call.1} parent=0
    _
  %s8 = ssub.s32 1, %s6
  %s9 = scalar_select 0, %s8, %s6
  $region1: #{tpu_custom_call.1} parent=0
    #allocation2 [shape = 'u8[16384]{0}', space=vmem, size = 0x4000, scoped, tag = 'output window, operand 0']
    #allocation3 [shape = 's32[2]{0}', space=sflag, size = 0x8, scoped, tag = 'scoped memory for tpu_custom_call.1']
    %10 = vsyncpa [#allocation3], 0
    %s11 = scalar_lea.sflag [#allocation3], 1
    %12 = vsyncpa %s11, 0
    loop: start=0, step=1, limit=5
    $region2: #{tpu_custom_call.1} parent=1 // loop_pre_header
      _
    $region3: #{tpu_custom_call.1} parent=1 // loop_header
      %s14 = sphi 0, %s18
      %p15 = scmp.ge.s32.totalorder %s14, 5
      %s24 = sphi 0, %s26
      %s27 = sphi 0, %s24
      %s28 = sphi 0, %s27
      %s44 = sphi 0, %s28
      %s48 = sphi 0, %s48
      %s50 = sphi 0, %s48
      %s51 = sphi 0, %s50
      %s65 = sphi 0, %s51
      %s69 = sphi 0, %s69
      %s71 = sphi 0, %s69
      %s72 = sphi 0, %s71
      %s86 = sphi 0, %s72
      %s90 = sphi 0, %s90
      %s92 = sphi 0, %s90
      %s93 = sphi 0, %s92
      %s107 = sphi 0, %s93
      %s111 = sphi 0, %s111
      %s113 = sphi 0, %s111
      %s114 = sphi 0, %s113
      %s128 = sphi 0, %s114
      %s134 = sphi 0, %s136
      %s137 = sphi 0, %s134
      %s138 = sphi 0, %s137
      %s154 = sphi 0, %s138
    $region4: #{tpu_custom_call.1} parent=1 // loop_header_branch
      %17 = sbr.rel (%p15) target = $region8
    $region5: #{tpu_custom_call.1} parent=1 // loop_body
      %s19 = ssub.s32 %s14, 1
      %s20 = ssub.s32 %s14, 2
      %s21 = sadd.s32 %s14, 1
      %s22 = ssub.s32 %s14, %s21
      %p23 = scmp.eq.s32.totalorder %s22, 0
      %s25 = sadd.s32 %s24, 1
      %s26 = scalar_select %p23, %s24, %s25
      %p29 = pneg %p23
      %p30 = scmp.eq.s32.totalorder %s14, 2
      %p31 = por %p29, %p30
      %p32 = scmp.ne.s32.totalorder %s24, %s27
      %p33 = scmp.eq.s32.totalorder %s14, 0
      %p34 = por %p32, %p33
      %p35 = scmp.ne.s32.totalorder %s24, %s27
      %p36 = scmp.eq.s32.totalorder %s19, 2
      %p37 = por %p35, %p36
      %p38 = scmp.ne.s32.totalorder %s27, %s28
      %p39 = scmp.eq.s32.totalorder %s19, 0
      %p40 = por %p38, %p39
      %p41 = scmp.ne.s32.totalorder %s27, %s28
      %p42 = scmp.eq.s32.totalorder %s20, 2
      %p43 = por %p41, %p42
      %p45 = scmp.ne.s32.totalorder %s28, %s44
      %p46 = scmp.eq.s32.totalorder %s20, 0
      %p47 = por %p45, %p46
      %s49 = sadd.s32 %s48, 1
      %p52 = scmp.eq.s32.totalorder %s14, 2
      %p53 = scmp.ne.s32.totalorder %s48, %s50
      %p54 = scmp.eq.s32.totalorder %s14, 0
      %p55 = por %p53, %p54
      %p56 = scmp.ne.s32.totalorder %s48, %s50
      %p57 = scmp.eq.s32.totalorder %s19, 2
      %p58 = por %p56, %p57
      %p59 = scmp.ne.s32.totalorder %s50, %s51
      %p60 = scmp.eq.s32.totalorder %s19, 0
      %p61 = por %p59, %p60
      %p62 = scmp.ne.s32.totalorder %s50, %s51
      %p63 = scmp.eq.s32.totalorder %s20, 2
      %p64 = por %p62, %p63
      %p66 = scmp.ne.s32.totalorder %s51, %s65
      %p67 = scmp.eq.s32.totalorder %s20, 0
      %p68 = por %p66, %p67
      %s70 = sadd.s32 %s69, 1
      %p73 = scmp.eq.s32.totalorder %s14, 2
      %p74 = scmp.ne.s32.totalorder %s69, %s71
      %p75 = scmp.eq.s32.totalorder %s14, 0
      %p76 = por %p74, %p75
      %p77 = scmp.ne.s32.totalorder %s69, %s71
      %p78 = scmp.eq.s32.totalorder %s19, 2
      %p79 = por %p77, %p78
      %p80 = scmp.ne.s32.totalorder %s71, %s72
      %p81 = scmp.eq.s32.totalorder %s19, 0
      %p82 = por %p80, %p81
      %p83 = scmp.ne.s32.totalorder %s71, %s72
      %p84 = scmp.eq.s32.totalorder %s20, 2
      %p85 = por %p83, %p84
      %p87 = scmp.ne.s32.totalorder %s72, %s86
      %p88 = scmp.eq.s32.totalorder %s20, 0
      %p89 = por %p87, %p88
      %s91 = sadd.s32 %s90, 1
      %p94 = scmp.eq.s32.totalorder %s14, 2
      %p95 = scmp.ne.s32.totalorder %s90, %s92
      %p96 = scmp.eq.s32.totalorder %s14, 0
      %p97 = por %p95, %p96
      %p98 = scmp.ne.s32.totalorder %s90, %s92
      %p99 = scmp.eq.s32.totalorder %s19, 2
      %p100 = por %p98, %p99
      %p101 = scmp.ne.s32.totalorder %s92, %s93
      %p102 = scmp.eq.s32.totalorder %s19, 0
      %p103 = por %p101, %p102
      %p104 = scmp.ne.s32.totalorder %s92, %s93
      %p105 = scmp.eq.s32.totalorder %s20, 2
      %p106 = por %p104, %p105
      %p108 = scmp.ne.s32.totalorder %s93, %s107
      %p109 = scmp.eq.s32.totalorder %s20, 0
      %p110 = por %p108, %p109
      %s112 = sadd.s32 %s111, 1
      %p115 = scmp.eq.s32.totalorder %s14, 2
      %p116 = scmp.ne.s32.totalorder %s111, %s113
      %p117 = scmp.eq.s32.totalorder %s14, 0
      %p118 = por %p116, %p117
      %p119 = scmp.ne.s32.totalorder %s111, %s113
      %p120 = scmp.eq.s32.totalorder %s19, 2
      %p121 = por %p119, %p120
      %p122 = scmp.ne.s32.totalorder %s113, %s114
      %p123 = scmp.eq.s32.totalorder %s19, 0
      %p124 = por %p122, %p123
      %p125 = scmp.ne.s32.totalorder %s113, %s114
      %p126 = scmp.eq.s32.totalorder %s20, 2
      %p127 = por %p125, %p126
      %p129 = scmp.ne.s32.totalorder %s114, %s128
      %p130 = scmp.eq.s32.totalorder %s20, 0
      %p131 = por %p129, %p130
      %s132 = ssub.s32 %s14, %s21
      %p133 = scmp.eq.s32.totalorder %s132, 0
      %s135 = sadd.s32 %s134, 1
      %s136 = scalar_select %p133, %s134, %s135
      %p139 = pneg %p133
      %p140 = scmp.eq.s32.totalorder %s14, 2
      %p141 = por %p139, %p140
      %p142 = scmp.ne.s32.totalorder %s134, %s137
      %p143 = scmp.eq.s32.totalorder %s14, 0
      %p144 = por %p142, %p143
      %p145 = scmp.ne.s32.totalorder %s134, %s137
      %p146 = scmp.eq.s32.totalorder %s19, 2
      %p147 = por %p145, %p146
      %p148 = scmp.ne.s32.totalorder %s137, %s138
      %p149 = scmp.eq.s32.totalorder %s19, 0
      %p150 = por %p148, %p149
      %p151 = scmp.ne.s32.totalorder %s137, %s138
      %p152 = scmp.eq.s32.totalorder %s20, 2
      %p153 = por %p151, %p152
      %p155 = scmp.ne.s32.totalorder %s138, %s154
      %p156 = scmp.eq.s32.totalorder %s20, 0
      %p157 = por %p155, %p156
      %p158 = scmp.le.s32.totalorder 1, %s14
      %p159 = scmp.lt.s32.totalorder %s14, 4
      %p160 = pnand %p158, %p159
      %p161 = pneg %p160
      // Predicated region
      $region9: #{tpu_custom_call.1} parent=5 // pred_check
        _
      $region10: #{tpu_custom_call.1} parent=5 // pred_check_branch
        %163 = sbr.rel (%p160) target = $region12
      $region11: #{tpu_custom_call.1} parent=5 // pred_region
        %s164 = ssub.s32 %s14, 1
        // Predicated region
        $region13: #{tpu_custom_call.1} parent=11 // pred_check
          %p165 = pneg %p61
        $region14: #{tpu_custom_call.1} parent=11 // pred_check_branch
          %167 = sbr.rel (%p165) target = $region16
        $region15: #{tpu_custom_call.1} parent=11 // pred_region
          _
        $region16: #{tpu_custom_call.1} parent=11 // pred_fallthru
          _
        // Predicated region
        $region17: #{tpu_custom_call.1} parent=11 // pred_check
          %p168 = pneg %p82
        $region18: #{tpu_custom_call.1} parent=11 // pred_check_branch
          %170 = sbr.rel (%p168) target = $region20
        $region19: #{tpu_custom_call.1} parent=11 // pred_region
          _
        $region20: #{tpu_custom_call.1} parent=11 // pred_fallthru
          _
        // Predicated region
        $region21: #{tpu_custom_call.1} parent=11 // pred_check
          %p171 = pneg %p103
        $region22: #{tpu_custom_call.1} parent=11 // pred_check_branch
          %173 = sbr.rel (%p171) target = $region24
        $region23: #{tpu_custom_call.1} parent=11 // pred_region
          _
        $region24: #{tpu_custom_call.1} parent=11 // pred_fallthru
          _
        // Predicated region
        $region25: #{tpu_custom_call.1} parent=11 // pred_check
          %p174 = pneg %p124
        $region26: #{tpu_custom_call.1} parent=11 // pred_check_branch
          %176 = sbr.rel (%p174) target = $region28
        $region27: #{tpu_custom_call.1} parent=11 // pred_region
          _
        $region28: #{tpu_custom_call.1} parent=11 // pred_fallthru
          _
      $region12: #{tpu_custom_call.1} parent=5 // pred_fallthru
        _
      %p177 = scmp.lt.s32.totalorder %s14, 3
      // Predicated region
      $region29: #{tpu_custom_call.1} parent=5 // pred_check
        %p178 = pneg %p177
      $region30: #{tpu_custom_call.1} parent=5 // pred_check_branch
        %180 = sbr.rel (%p178) target = $region32
      $region31: #{tpu_custom_call.1} parent=5 // pred_region
        // Predicated region
        $region33: #{tpu_custom_call.1} parent=31 // pred_check
          %p181 = pneg %p34
        $region34: #{tpu_custom_call.1} parent=31 // pred_check_branch
          %183 = sbr.rel (%p181) target = $region36
        $region35: #{tpu_custom_call.1} parent=31 // pred_region
          %s184 = smul.u32 2, %s14
          %p185 = scmp.lt.s32.totalorder %s184, 5
          %s186 = scalar_select %p185, %s184, 5
          %s187 = smul.addr %s186, 4
          %s188 = scalar_lea.vmem %s0, %s187
          %s189 = smul.u32 2, %s14
        $region36: #{tpu_custom_call.1} parent=31 // pred_fallthru
          _
      $region32: #{tpu_custom_call.1} parent=5 // pred_fallthru
        _
      %p190 = scmp.le.s32.totalorder 1, %s14
      %p191 = scmp.lt.s32.totalorder %s14, 4
      %p192 = pnand %p190, %p191
      %p193 = pneg %p192
      // Predicated region
      $region37: #{tpu_custom_call.1} parent=5 // pred_check
        _
      $region38: #{tpu_custom_call.1} parent=5 // pred_check_branch
        %195 = sbr.rel (%p192) target = $region40
      $region39: #{tpu_custom_call.1} parent=5 // pred_region
        %s196 = ssub.s32 %s14, 1
        %s197 = smul.u32 2, %s19
        %p198 = scmp.lt.s32.totalorder %s197, 5
        %s199 = scalar_select %p198, %s197, 5
        %s200 = smul.addr %s199, 4
        %s201 = scalar_lea.vmem %s0, %s200
        %p202 = pneg %p40
        %p203 = pneg %p37
        %p204 = pneg %p61
        %p205 = pneg %p58
        %p206 = pneg %p82
        %p207 = pneg %p79
        %p208 = pneg %p103
        %p209 = pneg %p100
        %p210 = pneg %p124
        %p211 = pneg %p121
        %p212 = pneg %p150
        %p213 = pneg %p147
        %s214 = sand.u32 %s137, 1
        %s215 = scalar_lea.sflag [#allocation3], %s214
        %s216 = sand.u32 %s137, 1
        %s217 = smul.addr %s216, 16
        %s218 = scalar_lea.vmem [#allocation2], %s217
        %s219 = smul.u32 2, %s19
        %p220 = scmp.lt.s32.totalorder %s219, 5
        %s221 = scalar_select %p220, %s219, 5
        %s222 = smul.addr %s221, 4
        %s223 = scalar_lea.vmem %s0, %s222
        %s224 = smul.u32 2, %s19
        %s225 = smul.u32 2, %s19
        %v227 = vld [vmem:[%s223] sm:$0xf]
        %v228 = vld [vmem:[%s223 + $0x4] sm:$0xf]
        %v229 = vld [vmem:[%s1] sm:$0xf]
        %v230 = vld [vmem:[%s1 + $0x4] sm:$0xf]
        %v231 = vld [vmem:[%s1 + $0x8] sm:$0xf]
        %v232 = vld [vmem:[%s1 + $0xc] sm:$0xf]
        %v233 = vld [vmem:[%s2] sm:$0x1]
        %v235 = vperm.slane %v233, 0
        %v239 = vunpack.c.l.b16 %v227
        %v240 = vunpack.c.l.b16 %v228
        %v241 = vpack.c.b16 %v240, %v239
        %v246 = vunpack.c.l.b16 %v229
        %v247 = vunpack.c.l.b16 %v230
        %v248 = vunpack.c.l.b16 %v231
        %v249 = vunpack.c.l.b16 %v232
        %v250 = vpack.c.b16 %v247, %v246
        %v251 = vpack.c.b16 %v249, %v248
        %vm254 = vcmask 261120
        %v256 = vsel %vm254, %v241, 0
        %258 = vmatpush.bf16.msra.mxu0 0
        %259 = vmatpush.bf16.msra.mxu0 0
        %260 = vmatpush.bf16.msra.mxu0 0
        %261 = vmatpush.bf16.msra.mxu0 0
        %262 = vmatpush.bf16.msra.mxu0 0
        %263 = vmatpush.bf16.msra.mxu0 0
        %264 = vmatpush.bf16.msra.mxu0 %v251
        %265 = vmatpush.bf16.msra.mxu0 %v250
        %266 = vmatmul.bf16.gmra.mxu0 %v256
        %v267 = vpop.f32.mrf.mxu0
        %v268 = vadd.f32 %v235, %v267
        %v269 = vpop.f32.mrf.mxu0
        %v270 = vadd.f32 %v235, %v269
        %271 = vdwg.mxu0
        %v272 = vmax.f32 %v268, 0.0
        %v273 = vmax.f32 %v270, 0.0
        %v274 = vpack.c.bf16 %v273, %v272
        %v275 = vld [vmem:[%s3] sm:$0xf]
        %v276 = vld [vmem:[%s3 + $0x4] sm:$0xf]
        %v277 = vld [vmem:[%s4] sm:$0x1]
        %v279 = vperm.slane %v277, 0
        %v283 = vunpack.c.l.b16 %v275
        %v284 = vunpack.c.l.b16 %v276
        %v285 = vpack.c.b16 %v284, %v283
        %vm287 = vcmask 130048
        %v289 = vsel %vm287, %v274, 0
        %291 = vmatpush.bf16.msra.mxu0 0
        %292 = vmatpush.bf16.msra.mxu0 0
        %293 = vmatpush.bf16.msra.mxu0 0
        %294 = vmatpush.bf16.msra.mxu0 0
        %295 = vmatpush.bf16.msra.mxu0 0
        %296 = vmatpush.bf16.msra.mxu0 0
        %297 = vmatpush.bf16.msra.mxu0 0
        %298 = vmatpush.bf16.msra.mxu0 %v285
        %299 = vmatmul.bf16.gmra.mxu0 %v289
        %v300 = vpop.f32.mrf.mxu0
        %v301 = vadd.f32 %v279, %v300
        %v302 = vpop.f32.mrf.mxu0
        %v303 = vadd.f32 %v279, %v302
        %304 = vdwg.mxu0
        %305 = vst [vmem:[%s218] sm:$0xff] %v301
        %306 = vst [vmem:[%s218 + $0x8] sm:$0xff] %v303
        %s307 = sand.u32 %s137, 1
        %s308 = scalar_lea.sflag [#allocation3], %s307
        %s309 = sand.u32 %s137, 1
        %s310 = smul.addr %s309, 16
        %s311 = scalar_lea.vmem [#allocation2], %s310
        // Predicated region
        $region41: #{tpu_custom_call.1} parent=39 // pred_check
          %p312 = pneg %p147
        $region42: #{tpu_custom_call.1} parent=39 // pred_check_branch
          %314 = sbr.rel (%p312) target = $region44
        $region43: #{tpu_custom_call.1} parent=39 // pred_region
          %s315 = smul.u32 2, %s19
          %317 = vsyncadd %s308, 0
          %s318 = smul.addr %s315, 8
          %s319 = scalar_lea.hbm %s5, %s318
          %s320 = sshll.u32 %s311, 4
          %s321 = int_to_ptr.vmem [resolvable:$true] %s320
          %s322 = sshll.u32 %s319, 4
          %s323 = int_to_ptr.hbm [resolvable:$true] %s322
          %328 = dma.vmem_to_hbm [thread:$0]  %s321, 256, %s323, %s308, 128, 128, 8
        $region44: #{tpu_custom_call.1} parent=39 // pred_fallthru
          _
      $region40: #{tpu_custom_call.1} parent=5 // pred_fallthru
        _
      %p329 = scmp.le.s32.totalorder 2, %s14
      // Predicated region
      $region45: #{tpu_custom_call.1} parent=5 // pred_check
        %p330 = pneg %p329
      $region46: #{tpu_custom_call.1} parent=5 // pred_check_branch
        %332 = sbr.rel (%p330) target = $region48
      $region47: #{tpu_custom_call.1} parent=5 // pred_region
        %s333 = ssub.s32 %s14, 2
        // Predicated region
        $region49: #{tpu_custom_call.1} parent=47 // pred_check
          %p334 = pneg %p153
        $region50: #{tpu_custom_call.1} parent=47 // pred_check_branch
          %336 = sbr.rel (%p334) target = $region52
        $region51: #{tpu_custom_call.1} parent=47 // pred_region
          %s337 = sand.u32 %s138, 1
          %s338 = scalar_lea.sflag [#allocation3], %s337
          %s339 = sand.u32 %s138, 1
          %s340 = smul.addr %s339, 16
          %s341 = scalar_lea.vmem [#allocation2], %s340
          %343 = dma.done %s338, 256
        $region52: #{tpu_custom_call.1} parent=47 // pred_fallthru
          _
      $region48: #{tpu_custom_call.1} parent=5 // pred_fallthru
        _
    $region6: #{tpu_custom_call.1} parent=1 // loop_footer
      %s18 = sadd.s32 1, %s14
    $region7: #{tpu_custom_call.1} parent=1 // loop_footer_branch
      %13 = sbr.rel target = $region3
    $region8: #{tpu_custom_call.1} parent=1 // loop_exit
      _
    %344 = vsyncpa [#allocation3], 1
    %s345 = scalar_lea.sflag [#allocation3], 1
    %346 = vsyncpa %s345, 1

</llo_original>
